<compile_context>
chip_gen: v7x
topology: tpu7x:2x2x1
jax: 0.10.0
libtpu: 0.0.40
codegen_flags: <defaults>
</compile_context>

<pallas_src>
import jax
import jax.numpy as jnp
from jax.experimental import pallas as pl
from jax.experimental.pallas import tpu as pltpu


def _textcnn_fused_kernel(x_ref, w_ref, cbias_ref, tmask_ref, fcw_ref, fcb_ref,
                          o_ref):
    # x_ref:     (Bt, S, D)      hidden-state tile
    # w_ref:     (max_k, D, TF)  stacked conv weights (taps >= branch k are zero)
    # cbias_ref: (1, TF)         concatenated conv biases
    # tmask_ref: (S, TF)         0.0 where time step valid, -1e30 otherwise
    # fcw_ref:   (TF, L), fcb_ref: (1, L)
    # o_ref:     (Bt, L)         logits
    bt, s, d = x_ref.shape
    max_k = w_ref.shape[0]
    tf = w_ref.shape[2]
    n_rows = bt * s

    xf = x_ref[...].reshape(n_rows, d)        # fold batch into the matmul M dim

    # acc[b*S + t, f] = sum_j x[b, t + j, :] @ W[j, :, f]
    acc = jnp.dot(xf, w_ref[0], preferred_element_type=jnp.float32)
    for j in range(1, max_k):                 # static unroll over taps
        y = jnp.dot(xf, w_ref[j], preferred_element_type=jnp.float32)
        # Roll rows up by j (shift = n_rows - j == -j mod n_rows, jnp.roll
        # convention). Rows wrapping across batch / array boundaries only land
        # on time steps the additive time mask removes below.
        acc = acc + pltpu.roll(y, n_rows - j, axis=0)

    acc = acc.reshape(bt, s, tf) + tmask_ref[...][None, :, :]
    m = jnp.max(acc, axis=1)                  # MaxPool2d((S-k+1, 1)) == time max
    feats = jnp.maximum(m + cbias_ref[...], 0.0)   # bias + ReLU hoisted past max
    # TODO(synk): F.dropout in the PyTorch forward defaults to training=True
    # (stochastic even at inference); eval-mode identity semantics used here.
    o_ref[...] = (jnp.dot(feats, fcw_ref[...], preferred_element_type=jnp.float32)
                  + fcb_ref[...])


def pack_textcnn_params(convs, fc_w, fc_b, sentence_max_size):
    """Stack per-branch conv weights/biases and build the time-validity mask."""
    s = sentence_max_size
    max_k = max(w.shape[0] for w, _ in convs)
    d = convs[0][0].shape[1]
    total_f = sum(w.shape[2] for w, _ in convs)

    w_stack = jnp.zeros((max_k, d, total_f), jnp.float32)
    biases, mask_cols = [], []
    t_idx = jnp.arange(s)[:, None]
    col = 0
    for w, b in convs:
        k, _, f = w.shape
        w_stack = w_stack.at[:k, :, col:col + f].set(w.astype(jnp.float32))
        biases.append(b.astype(jnp.float32))
        out_len = s - k + 1
        mask_cols.append(
            jnp.broadcast_to(jnp.where(t_idx < out_len, 0.0, -1e30), (s, f)))
        col += f

    return {
        "w_stack": w_stack,
        "conv_bias": jnp.concatenate(biases, axis=1),
        "time_mask": jnp.concatenate(mask_cols, axis=1).astype(jnp.float32),
        "fc_w": fc_w.astype(jnp.float32),
        "fc_b": fc_b.astype(jnp.float32),
    }


def textcnn_forward(params, hidden_states, *, batch_tile=None):
    """TextCNN.forward starting from bert's last_hidden_state (B, S, D)."""
    b, s, d = hidden_states.shape
    w_stack = params["w_stack"]
    max_k, _, total_f = w_stack.shape
    label_size = params["fc_w"].shape[1]

    bt = b if batch_tile is None else min(batch_tile, b)
    assert b % bt == 0, "batch must be divisible by the batch tile"
    # Output block (bt, L): its sublane dim must be a multiple of 8 unless it
    # spans the full batch dim.
    assert bt == b or bt % 8 == 0, "batch_tile must be 8-aligned when < batch"

    return pl.pallas_call(
        _textcnn_fused_kernel,
        out_shape=jax.ShapeDtypeStruct((b, label_size), jnp.float32),
        grid_spec=pltpu.PrefetchScalarGridSpec(
            num_scalar_prefetch=0,
            grid=(b // bt,),
            in_specs=[
                pl.BlockSpec((bt, s, d), lambda i: (i, 0, 0)),
                pl.BlockSpec((max_k, d, total_f), lambda i: (0, 0, 0)),
                pl.BlockSpec((1, total_f), lambda i: (0, 0)),
                pl.BlockSpec((s, total_f), lambda i: (0, 0)),
                pl.BlockSpec((total_f, label_size), lambda i: (0, 0)),
                pl.BlockSpec((1, label_size), lambda i: (0, 0)),
            ],
            out_specs=pl.BlockSpec((bt, label_size), lambda i: (i, 0)),
        ),
        compiler_params=pltpu.CompilerParams(
            # Batch-tile axis shards across TensorCores (v7x megacore).
            dimension_semantics=("parallel",)),
    )(hidden_states, w_stack, params["conv_bias"], params["time_mask"],
      params["fc_w"], params["fc_b"])


def textcnn_reference(hidden_states, convs, fc_w, fc_b):
    """Pure-JAX replica of the PyTorch forward (eval-mode dropout)."""
    b, s, d = hidden_states.shape
    hi = jax.lax.Precision.HIGHEST
    feats = []
    for w, bias in convs:
        k, _, f = w.shape
        out_len = s - k + 1
        y = jnp.zeros((b, out_len, f), jnp.float32)
        for j in range(k):
            y = y + jnp.einsum("btd,df->btf", hidden_states[:, j:j + out_len, :],
                               w[j], precision=hi)
        y = jnp.maximum(y + bias[None, :, :], 0.0)
        feats.append(jnp.max(y, axis=1))
    out = jnp.concatenate(feats, axis=1)
    return jnp.dot(out, fc_w, precision=hi) + fc_b


if __name__ == "__main__":
    B = 2                 # batch
    S = 16                # sentence_max_size
    D = 32                # vec_dim (stand-in for BERT hidden size 768)
    filter_num = 8
    kernel_list = [2, 3, 4]
    label_size = 4

    key = jax.random.PRNGKey(0)
    k_x, k_p = jax.random.split(key)

    # TODO(synk): the real module first runs input_ids through bert-base-uncased;
    # we substitute deterministic random hidden states (B, S, D) instead.
    hidden_states = jax.random.normal(k_x, (B, S, D), dtype=jnp.float32)

    pkeys = jax.random.split(k_p, 2 * len(kernel_list) + 2)
    convs = []
    for i, k in enumerate(kernel_list):
        # PyTorch Conv2d weight (F, 1, k, D) stored here as (k, D, F).
        w = jax.random.normal(pkeys[2 * i], (k, D, filter_num), jnp.float32) * 0.1
        b = jax.random.normal(pkeys[2 * i + 1], (1, filter_num), jnp.float32) * 0.1
        convs.append((w, b))
    # nn.Linear weight (label_size, in_features) stored transposed as (in, out).
    fc_w = jax.random.normal(pkeys[-2], (filter_num * len(kernel_list), label_size),
                             jnp.float32) * 0.1
    fc_b = jax.random.normal(pkeys[-1], (1, label_size), jnp.float32) * 0.1

    params = pack_textcnn_params(convs, fc_w, fc_b, S)
    out = jax.block_until_ready(textcnn_forward(params, hidden_states))

    assert out.shape == (B, label_size), out.shape
    assert out.dtype == jnp.float32, out.dtype

    ref = jax.block_until_ready(textcnn_reference(hidden_states, convs, fc_w, fc_b))
    max_err = float(jnp.max(jnp.abs(out - ref)))
    assert jnp.allclose(out, ref, rtol=1e-2, atol=1e-2), f"max abs err {max_err}"

    print("KERNEL_OK")
</pallas_src>

<mosaic_0001>
module attributes {stable_mosaic.version = 11 : i64} {
  func.func @_textcnn_fused_kernel(%arg0: i32, %arg1: memref<2x16x32xf32, #tpu.memory_space<vmem>>, %arg2: memref<4x32x24xf32, #tpu.memory_space<vmem>>, %arg3: memref<1x24xf32, #tpu.memory_space<vmem>>, %arg4: memref<16x24xf32, #tpu.memory_space<vmem>>, %arg5: memref<24x4xf32, #tpu.memory_space<vmem>>, %arg6: memref<1x4xf32, #tpu.memory_space<vmem>>, %arg7: memref<2x4xf32, #tpu.memory_space<vmem>>) attributes {dimension_semantics = [#tpu.dimension_semantics<parallel>], iteration_bounds = array<i64: 1>, scalar_prefetch = 0 : i64, scratch_operands = 0 : i64, tpu.core_type = #tpu.core_type<tc>, window_params = [{transform_indices = @transform_0, window_bounds = array<i64: 2, 16, 32>}, {pipeline_mode = #tpu.pipeline_mode<synchronous>, transform_indices = @transform_1, window_bounds = array<i64: 4, 32, 24>}, {pipeline_mode = #tpu.pipeline_mode<synchronous>, transform_indices = @transform_2, window_bounds = array<i64: 1, 24>}, {pipeline_mode = #tpu.pipeline_mode<synchronous>, transform_indices = @transform_3, window_bounds = array<i64: 16, 24>}, {pipeline_mode = #tpu.pipeline_mode<synchronous>, transform_indices = @transform_4, window_bounds = array<i64: 24, 4>}, {pipeline_mode = #tpu.pipeline_mode<synchronous>, transform_indices = @transform_5, window_bounds = array<i64: 1, 4>}, {transform_indices = @transform_6, window_bounds = array<i64: 2, 4>}]} {
    %c0 = arith.constant 0 : index
    %c0_0 = arith.constant 0 : index
    %c0_1 = arith.constant 0 : index
    %0 = vector.load %arg1[%c0, %c0_0, %c0_1] : memref<2x16x32xf32, #tpu.memory_space<vmem>>, vector<2x16x32xf32>
    %1 = vector.shape_cast %0 : vector<2x16x32xf32> to vector<32x32xf32>
    %c0_2 = arith.constant 0 : index
    %c0_3 = arith.constant 0 : index
    %c0_4 = arith.constant 0 : index
    %2 = vector.load %arg2[%c0_2, %c0_3, %c0_4] : memref<4x32x24xf32, #tpu.memory_space<vmem>>, vector<1x32x24xf32>
    %3 = vector.shape_cast %2 : vector<1x32x24xf32> to vector<32x24xf32>
    %cst = arith.constant dense<0.000000e+00> : vector<32x24xf32>
    %4 = tpu.matmul %1, %3, %cst {dimension_numbers = #tpu.dot_dimension_numbers<[1], [0], [0], [1], [0, 0, 1, 1], [], []>} : vector<32x32xf32>, vector<32x24xf32>, vector<32x24xf32> -> vector<32x24xf32>
    %c1 = arith.constant 1 : index
    %c0_5 = arith.constant 0 : index
    %c0_6 = arith.constant 0 : index
    %5 = vector.load %arg2[%c1, %c0_5, %c0_6] : memref<4x32x24xf32, #tpu.memory_space<vmem>>, vector<1x32x24xf32>
    %6 = vector.shape_cast %5 : vector<1x32x24xf32> to vector<32x24xf32>
    %cst_7 = arith.constant dense<0.000000e+00> : vector<32x24xf32>
    %7 = tpu.matmul %1, %6, %cst_7 {dimension_numbers = #tpu.dot_dimension_numbers<[1], [0], [0], [1], [0, 0, 1, 1], [], []>} : vector<32x32xf32>, vector<32x24xf32>, vector<32x24xf32> -> vector<32x24xf32>
    %c31_i32 = arith.constant 31 : i32
    %8 = tpu.dynamic_rotate %7 by %c31_i32 dim 0 : vector<32x24xf32>, i32 -> vector<32x24xf32>
    %9 = arith.addf %4, %8 : vector<32x24xf32>
    %c2 = arith.constant 2 : index
    %c0_8 = arith.constant 0 : index
    %c0_9 = arith.constant 0 : index
    %10 = vector.load %arg2[%c2, %c0_8, %c0_9] : memref<4x32x24xf32, #tpu.memory_space<vmem>>, vector<1x32x24xf32>
    %11 = vector.shape_cast %10 : vector<1x32x24xf32> to vector<32x24xf32>
    %cst_10 = arith.constant dense<0.000000e+00> : vector<32x24xf32>
    %12 = tpu.matmul %1, %11, %cst_10 {dimension_numbers = #tpu.dot_dimension_numbers<[1], [0], [0], [1], [0, 0, 1, 1], [], []>} : vector<32x32xf32>, vector<32x24xf32>, vector<32x24xf32> -> vector<32x24xf32>
    %c30_i32 = arith.constant 30 : i32
    %13 = tpu.dynamic_rotate %12 by %c30_i32 dim 0 : vector<32x24xf32>, i32 -> vector<32x24xf32>
    %14 = arith.addf %9, %13 : vector<32x24xf32>
    %c3 = arith.constant 3 : index
    %c0_11 = arith.constant 0 : index
    %c0_12 = arith.constant 0 : index
    %15 = vector.load %arg2[%c3, %c0_11, %c0_12] : memref<4x32x24xf32, #tpu.memory_space<vmem>>, vector<1x32x24xf32>
    %16 = vector.shape_cast %15 : vector<1x32x24xf32> to vector<32x24xf32>
    %cst_13 = arith.constant dense<0.000000e+00> : vector<32x24xf32>
    %17 = tpu.matmul %1, %16, %cst_13 {dimension_numbers = #tpu.dot_dimension_numbers<[1], [0], [0], [1], [0, 0, 1, 1], [], []>} : vector<32x32xf32>, vector<32x24xf32>, vector<32x24xf32> -> vector<32x24xf32>
    %c29_i32 = arith.constant 29 : i32
    %18 = tpu.dynamic_rotate %17 by %c29_i32 dim 0 : vector<32x24xf32>, i32 -> vector<32x24xf32>
    %19 = arith.addf %14, %18 : vector<32x24xf32>
    %20 = vector.shape_cast %19 : vector<32x24xf32> to vector<2x16x24xf32>
    %c0_14 = arith.constant 0 : index
    %c0_15 = arith.constant 0 : index
    %21 = vector.load %arg4[%c0_14, %c0_15] : memref<16x24xf32, #tpu.memory_space<vmem>>, vector<16x24xf32>
    %22 = vector.shape_cast %21 : vector<16x24xf32> to vector<1x16x24xf32>
    %23 = vector.broadcast %22 : vector<1x16x24xf32> to vector<2x16x24xf32>
    %24 = arith.addf %20, %23 : vector<2x16x24xf32>
    %cst_16 = arith.constant dense<0xFF800000> : vector<2x24xf32>
    %25 = vector.multi_reduction <maximumf>, %24, %cst_16 [1] : vector<2x16x24xf32> to vector<2x24xf32>
    %c0_17 = arith.constant 0 : index
    %c0_18 = arith.constant 0 : index
    %26 = vector.load %arg3[%c0_17, %c0_18] : memref<1x24xf32, #tpu.memory_space<vmem>>, vector<1x24xf32>
    %27 = vector.broadcast %26 : vector<1x24xf32> to vector<2x24xf32>
    %28 = arith.addf %25, %27 : vector<2x24xf32>
    %cst_19 = arith.constant 0.000000e+00 : f32
    %29 = vector.broadcast %cst_19 : f32 to vector<2x24xf32>
    %30 = arith.maximumf %28, %29 : vector<2x24xf32>
    %c0_20 = arith.constant 0 : index
    %c0_21 = arith.constant 0 : index
    %31 = vector.load %arg5[%c0_20, %c0_21] : memref<24x4xf32, #tpu.memory_space<vmem>>, vector<24x4xf32>
    %cst_22 = arith.constant dense<0.000000e+00> : vector<2x4xf32>
    %32 = tpu.matmul %30, %31, %cst_22 {dimension_numbers = #tpu.dot_dimension_numbers<[1], [0], [0], [1], [0, 0, 1, 1], [], []>} : vector<2x24xf32>, vector<24x4xf32>, vector<2x4xf32> -> vector<2x4xf32>
    %c0_23 = arith.constant 0 : index
    %c0_24 = arith.constant 0 : index
    %33 = vector.load %arg6[%c0_23, %c0_24] : memref<1x4xf32, #tpu.memory_space<vmem>>, vector<1x4xf32>
    %34 = vector.broadcast %33 : vector<1x4xf32> to vector<2x4xf32>
    %35 = arith.addf %32, %34 : vector<2x4xf32>
    %c0_25 = arith.constant 0 : index
    %c0_26 = arith.constant 0 : index
    %36 = vector.load %arg7[%c0_25, %c0_26] : memref<2x4xf32, #tpu.memory_space<vmem>>, vector<2x4xf32>
    tpu.vector_store %arg7[%c0_25, %c0_26], %35 {strides = array<i32>} : memref<2x4xf32, #tpu.memory_space<vmem>>, vector<2x4xf32>,
    return
  }
  func.func @transform_0(%arg0: i32) -> (i32, i32, i32) {
    %c0_i32 = arith.constant 0 : i32
    %c0_i32_0 = arith.constant 0 : i32
    %c0_i32_1 = arith.constant 0 : i32
    return %arg0, %c0_i32, %c0_i32_0 : i32, i32, i32
  }
  func.func @transform_1(%arg0: i32) -> (i32, i32, i32) {
    %c0_i32 = arith.constant 0 : i32
    %c0_i32_0 = arith.constant 0 : i32
    %c0_i32_1 = arith.constant 0 : i32
    %c0_i32_2 = arith.constant 0 : i32
    return %c0_i32, %c0_i32_0, %c0_i32_1 : i32, i32, i32
  }
  func.func @transform_2(%arg0: i32) -> (i32, i32) {
    %c0_i32 = arith.constant 0 : i32
    %c0_i32_0 = arith.constant 0 : i32
    %c0_i32_1 = arith.constant 0 : i32
    return %c0_i32, %c0_i32_0 : i32, i32
  }
  func.func @transform_3(%arg0: i32) -> (i32, i32) {
    %c0_i32 = arith.constant 0 : i32
    %c0_i32_0 = arith.constant 0 : i32
    %c0_i32_1 = arith.constant 0 : i32
    return %c0_i32, %c0_i32_0 : i32, i32
  }
  func.func @transform_4(%arg0: i32) -> (i32, i32) {
    %c0_i32 = arith.constant 0 : i32
    %c0_i32_0 = arith.constant 0 : i32
    %c0_i32_1 = arith.constant 0 : i32
    return %c0_i32, %c0_i32_0 : i32, i32
  }
  func.func @transform_5(%arg0: i32) -> (i32, i32) {
    %c0_i32 = arith.constant 0 : i32
    %c0_i32_0 = arith.constant 0 : i32
    %c0_i32_1 = arith.constant 0 : i32
    return %c0_i32, %c0_i32_0 : i32, i32
  }
  func.func @transform_6(%arg0: i32) -> (i32, i32) {
    %c0_i32 = arith.constant 0 : i32
    %c0_i32_0 = arith.constant 0 : i32
    return %arg0, %c0_i32 : i32, i32
  }
}

</mosaic_0001>

<llo_original>
// kernel: tpu_custom_call.1
$region0: #{tpu_custom_call.1}
  #allocation0 [shape = 'u32[]', space=smem, size = 0x4, offset = 0x4, fixed_abs, tag = 'smem constant byte address 0x4 - core index']
  #allocation1 [shape = 'u32[144,128]{1,0:T(1,128)}', space=vmem, size = 0x12000, scoped, tag = 'internal scratch']
  %s0 = inlined_call_operand.vmem [shape: f32[2,16,32], index: 0, kind: input, shape index: {}]
  %s1 = inlined_call_operand.vmem [shape: f32[4,32,24], index: 1, kind: input, shape index: {}]
  %s2 = inlined_call_operand.vmem [shape: f32[1,24], index: 2, kind: input, shape index: {}]
  %s3 = inlined_call_operand.vmem [shape: f32[16,24], index: 3, kind: input, shape index: {}]
  %s4 = inlined_call_operand.vmem [shape: f32[24,4], index: 4, kind: input, shape index: {}]
  %s5 = inlined_call_operand.vmem [shape: f32[1,4], index: 5, kind: input, shape index: {}]
  %s6 = inlined_call_operand.hbm [shape: f32[2,4], index: 6, kind: output, shape index: {}]
  %s7 = sld [smem:[#allocation0]]
  $region34: #{tpu_custom_call.1} parent=0
    _
  %s9 = ssub.s32 1, %s7
  %s10 = scalar_select 0, %s9, %s7
  $region1: #{tpu_custom_call.1} parent=0
    #allocation2 [shape = 'u8[1024]{0}', space=vmem, size = 0x400, scoped, tag = 'output window, operand 0, single buffered']
    #allocation3 [shape = 's32[1]{0}', space=sflag, size = 0x4, scoped, tag = 'scoped memory for tpu_custom_call.1']
    %11 = vsyncpa [#allocation3], 0
    // Predicated region
    $region2: #{tpu_custom_call.1} parent=1 // pred_check
      _
    $region3: #{tpu_custom_call.1} parent=1 // pred_check_branch
      %13 = sbr.rel (0) target = $region5
    $region4: #{tpu_custom_call.1} parent=1 // pred_region
      _
    $region5: #{tpu_custom_call.1} parent=1 // pred_fallthru
      _
    // Predicated region
    $region6: #{tpu_custom_call.1} parent=1 // pred_check
      _
    $region7: #{tpu_custom_call.1} parent=1 // pred_check_branch
      %15 = sbr.rel (0) target = $region9
    $region8: #{tpu_custom_call.1} parent=1 // pred_region
      _
    $region9: #{tpu_custom_call.1} parent=1 // pred_fallthru
      _
    // Predicated region
    $region10: #{tpu_custom_call.1} parent=1 // pred_check
      _
    $region11: #{tpu_custom_call.1} parent=1 // pred_check_branch
      %17 = sbr.rel (0) target = $region13
    $region12: #{tpu_custom_call.1} parent=1 // pred_region
      _
    $region13: #{tpu_custom_call.1} parent=1 // pred_fallthru
      _
    // Predicated region
    $region14: #{tpu_custom_call.1} parent=1 // pred_check
      _
    $region15: #{tpu_custom_call.1} parent=1 // pred_check_branch
      %19 = sbr.rel (0) target = $region17
    $region16: #{tpu_custom_call.1} parent=1 // pred_region
      _
    $region17: #{tpu_custom_call.1} parent=1 // pred_fallthru
      _
    // Predicated region
    $region18: #{tpu_custom_call.1} parent=1 // pred_check
      _
    $region19: #{tpu_custom_call.1} parent=1 // pred_check_branch
      %21 = sbr.rel (0) target = $region21
    $region20: #{tpu_custom_call.1} parent=1 // pred_region
      _
    $region21: #{tpu_custom_call.1} parent=1 // pred_fallthru
      _
    // Predicated region
    $region22: #{tpu_custom_call.1} parent=1 // pred_check
      _
    $region23: #{tpu_custom_call.1} parent=1 // pred_check_branch
      %23 = sbr.rel (0) target = $region25
    $region24: #{tpu_custom_call.1} parent=1 // pred_region
      _
    $region25: #{tpu_custom_call.1} parent=1 // pred_fallthru
      _
    %v24 = vld [vmem:[%s0] sm:$0xff]
    %v25 = vld [vmem:[%s0 + $0x8] sm:$0xff]
    %v26 = vld [vmem:[%s0 + $0x10] sm:$0xff]
    %v27 = vld [vmem:[%s0 + $0x18] sm:$0xff]
    %v28 = vld [vmem:[%s1] sm:$0xff]
    %v29 = vld [vmem:[%s1 + $0x8] sm:$0xff]
    %v30 = vld [vmem:[%s1 + $0x10] sm:$0xff]
    %v31 = vld [vmem:[%s1 + $0x18] sm:$0xff]
    %s32 = scalar_lea.vmem %s1, 32
    %v33 = vld [vmem:[%s32] sm:$0xff]
    %v34 = vld [vmem:[%s32 + $0x8] sm:$0xff]
    %v35 = vld [vmem:[%s32 + $0x10] sm:$0xff]
    %v36 = vld [vmem:[%s32 + $0x18] sm:$0xff]
    %vm37 = vcmask 261120
    %v39 = vsel %vm37, %v24, 0
    %v42 = vsel %vm37, %v25, 0
    %v45 = vsel %vm37, %v26, 0
    %v48 = vsel %vm37, %v27, 0
    %50 = vmatprep.subr.mxu0 0.0
    %51 = vmatpush1.msra.mxu0 %v33
    %52 = vmatprep.subr.mxu0 0.0
    %53 = vmatpush1.msra.mxu0 %v34
    %54 = vmatprep.subr.mxu0 0.0
    %55 = vmatpush1.msra.mxu0 %v35
    %56 = vmatprep.subr.mxu0 0.0
    %57 = vmatpush1.msra.mxu0 %v36
    %58 = vmatprep.subr.mxu0 0.0
    %59 = vmatpush1.msra.mxu0 0.0
    %60 = vmatprep.subr.mxu0 0.0
    %61 = vmatpush1.msra.mxu0 0.0
    %62 = vmatprep.subr.mxu0 0.0
    %63 = vmatpush1.msra.mxu0 0.0
    %64 = vmatprep.subr.mxu0 0.0
    %65 = vmatpush1.msra.mxu0 0.0
    %66 = vmatprep.subr.mxu0 0.0
    %67 = vmatpush1.msra.mxu0 0.0
    %68 = vmatprep.subr.mxu0 0.0
    %69 = vmatpush1.msra.mxu0 0.0
    %70 = vmatprep.subr.mxu0 0.0
    %71 = vmatpush1.msra.mxu0 0.0
    %72 = vmatprep.subr.mxu0 0.0
    %73 = vmatpush1.msra.mxu0 0.0
    %74 = vmatprep.subr.mxu0 0.0
    %75 = vmatpush1.msra.mxu0 0.0
    %76 = vmatprep.subr.mxu0 0.0
    %77 = vmatpush1.msra.mxu0 0.0
    %78 = vmatprep.subr.mxu0 0.0
    %79 = vmatpush1.msra.mxu0 0.0
    %80 = vmatprep.subr.mxu0 0.0
    %81 = vmatpush1.msra.mxu0 0.0
    %82 = vmatprep.subr.mxu0 0.0
    %83 = vmatpush1.msra.mxu0 0.0
    %84 = vmatprep.subr.mxu0 0.0
    %85 = vmatpush1.msra.mxu0 0.0
    %86 = vmatprep.subr.mxu0 0.0
    %87 = vmatpush1.msra.mxu0 0.0
    %88 = vmatprep.subr.mxu0 0.0
    %89 = vmatpush1.msra.mxu0 0.0
    %90 = vmatprep.subr.mxu0 0.0
    %91 = vmatpush1.msra.mxu0 0.0
    %92 = vmatprep.subr.mxu0 0.0
    %93 = vmatpush1.msra.mxu0 0.0
    %94 = vmatprep.subr.mxu0 0.0
    %95 = vmatpush1.msra.mxu0 0.0
    %96 = vmatprep.subr.mxu0 0.0
    %97 = vmatpush1.msra.mxu0 0.0
    %98 = vmatprep.subr.mxu0 0.0
    %99 = vmatpush1.msra.mxu0 0.0
    %100 = vmatprep.subr.mxu0 0.0
    %101 = vmatpush1.msra.mxu0 0.0
    %102 = vmatprep.subr.mxu0 0.0
    %103 = vmatpush1.msra.mxu0 0.0
    %104 = vmatprep.subr.mxu0 0.0
    %105 = vmatpush1.msra.mxu0 0.0
    %106 = vmatprep.subr.mxu0 0.0
    %107 = vmatpush1.msra.mxu0 0.0
    %108 = vmatprep.subr.mxu0 0.0
    %109 = vmatpush1.msra.mxu0 0.0
    %110 = vmatprep.subr.mxu0 0.0
    %111 = vmatpush1.msra.mxu0 0.0
    %112 = vmatprep.subr.mxu0 0.0
    %113 = vmatpush1.msra.mxu0 0.0
    %114 = vmatprep.mubr.f32.mxu0 0.0
    %115 = vmatmul.mubr.f32.gmra.mrb[0].mxu0 %v39
    %v116 = vpop.f32.mrb[0].mxu0
    %v117 = vadd.f32 0.0, %v116
    %v118 = vpop.f32.mrb[0].mxu0
    %119 = vmatprep.mubr.f32.mxu0 0.0
    %120 = vmatmul.mubr.f32.gmra.mrb[0].mxu0 %v42
    %v121 = vpop.f32.mrb[0].mxu0
    %v122 = vadd.f32 0.0, %v121
    %v123 = vpop.f32.mrb[0].mxu0
    %124 = vmatprep.mubr.f32.mxu0 0.0
    %125 = vmatmul.mubr.f32.gmra.mrb[0].mxu0 %v45
    %v126 = vpop.f32.mrb[0].mxu0
    %v127 = vadd.f32 0.0, %v126
    %v128 = vpop.f32.mrb[0].mxu0
    %129 = vmatprep.mubr.f32.mxu0 0.0
    %130 = vmatmul.mubr.f32.gmra.mrb[0].mxu0 %v48
    %v131 = vpop.f32.mrb[0].mxu0
    %v132 = vadd.f32 0.0, %v131
    %v133 = vpop.f32.mrb[0].mxu0
    %134 = vdwg.mxu0
    %v135 = vrot.slane %v117, 1
    %v136 = vrot.slane %v122, 1
    %v137 = vrot.slane %v127, 1
    %v138 = vrot.slane %v132, 1
    %v139 = vlaneseq
    %v140 = vshrl.u32 %v139, 7
    %vm141 = vcmp.lt.s32.totalorder %v140, 7
    %v142 = vsel %vm141, %v137, %v138
    %v143 = vsel %vm141, %v136, %v137
    %v144 = vsel %vm141, %v135, %v136
    %v145 = vsel %vm141, %v138, %v135
    %146 = vmatprep.subr.mxu0 0.0
    %147 = vmatpush1.msra.mxu0 %v28
    %148 = vmatprep.subr.mxu0 0.0
    %149 = vmatpush1.msra.mxu0 %v29
    %150 = vmatprep.subr.mxu0 0.0
    %151 = vmatpush1.msra.mxu0 %v30
    %152 = vmatprep.subr.mxu0 0.0
    %153 = vmatpush1.msra.mxu0 %v31
    %154 = vmatprep.subr.mxu0 0.0
    %155 = vmatpush1.msra.mxu0 0.0
    %156 = vmatprep.subr.mxu0 0.0
    %157 = vmatpush1.msra.mxu0 0.0
    %158 = vmatprep.subr.mxu0 0.0
    %159 = vmatpush1.msra.mxu0 0.0
    %160 = vmatprep.subr.mxu0 0.0
    %161 = vmatpush1.msra.mxu0 0.0
    %162 = vmatprep.subr.mxu0 0.0
    %163 = vmatpush1.msra.mxu0 0.0
    %164 = vmatprep.subr.mxu0 0.0
    %165 = vmatpush1.msra.mxu0 0.0
    %166 = vmatprep.subr.mxu0 0.0
    %167 = vmatpush1.msra.mxu0 0.0
    %168 = vmatprep.subr.mxu0 0.0
    %169 = vmatpush1.msra.mxu0 0.0
    %170 = vmatprep.subr.mxu0 0.0
    %171 = vmatpush1.msra.mxu0 0.0
    %172 = vmatprep.subr.mxu0 0.0
    %173 = vmatpush1.msra.mxu0 0.0
    %174 = vmatprep.subr.mxu0 0.0
    %175 = vmatpush1.msra.mxu0 0.0
    %176 = vmatprep.subr.mxu0 0.0
    %177 = vmatpush1.msra.mxu0 0.0
    %178 = vmatprep.subr.mxu0 0.0
    %179 = vmatpush1.msra.mxu0 0.0
    %180 = vmatprep.subr.mxu0 0.0
    %181 = vmatpush1.msra.mxu0 0.0
    %182 = vmatprep.subr.mxu0 0.0
    %183 = vmatpush1.msra.mxu0 0.0
    %184 = vmatprep.subr.mxu0 0.0
    %185 = vmatpush1.msra.mxu0 0.0
    %186 = vmatprep.subr.mxu0 0.0
    %187 = vmatpush1.msra.mxu0 0.0
    %188 = vmatprep.subr.mxu0 0.0
    %189 = vmatpush1.msra.mxu0 0.0
    %190 = vmatprep.subr.mxu0 0.0
    %191 = vmatpush1.msra.mxu0 0.0
    %192 = vmatprep.subr.mxu0 0.0
    %193 = vmatpush1.msra.mxu0 0.0
    %194 = vmatprep.subr.mxu0 0.0
    %195 = vmatpush1.msra.mxu0 0.0
    %196 = vmatprep.subr.mxu0 0.0
    %197 = vmatpush1.msra.mxu0 0.0
    %198 = vmatprep.subr.mxu0 0.0
    %199 = vmatpush1.msra.mxu0 0.0
    %200 = vmatprep.subr.mxu0 0.0
    %201 = vmatpush1.msra.mxu0 0.0
    %202 = vmatprep.subr.mxu0 0.0
    %203 = vmatpush1.msra.mxu0 0.0
    %204 = vmatprep.subr.mxu0 0.0
    %205 = vmatpush1.msra.mxu0 0.0
    %206 = vmatprep.subr.mxu0 0.0
    %207 = vmatpush1.msra.mxu0 0.0
    %208 = vmatprep.subr.mxu0 0.0
    %209 = vmatpush1.msra.mxu0 0.0
    %210 = vmatprep.mubr.f32.mxu0 0.0
    %211 = vmatmul.mubr.f32.gmra.mrb[0].mxu0 %v39
    %v212 = vpop.f32.mrb[0].mxu0
    %v213 = vadd.f32 %v144, %v212
    %v214 = vpop.f32.mrb[0].mxu0
    %215 = vmatprep.mubr.f32.mxu0 0.0
    %216 = vmatmul.mubr.f32.gmra.mrb[0].mxu0 %v42
    %v217 = vpop.f32.mrb[0].mxu0
    %v218 = vadd.f32 %v143, %v217
    %v219 = vpop.f32.mrb[0].mxu0
    %220 = vmatprep.mubr.f32.mxu0 0.0
    %221 = vmatmul.mubr.f32.gmra.mrb[0].mxu0 %v45
    %v222 = vpop.f32.mrb[0].mxu0
    %v223 = vadd.f32 %v142, %v222
    %v224 = vpop.f32.mrb[0].mxu0
    %225 = vmatprep.mubr.f32.mxu0 0.0
    %226 = vmatmul.mubr.f32.gmra.mrb[0].mxu0 %v48
    %v227 = vpop.f32.mrb[0].mxu0
    %v228 = vadd.f32 %v145, %v227
    %v229 = vpop.f32.mrb[0].mxu0
    %230 = vdwg.mxu0
    %s231 = scalar_lea.vmem %s1, 64
    %v232 = vld [vmem:[%s231] sm:$0xff]
    %v233 = vld [vmem:[%s231 + $0x8] sm:$0xff]
    %v234 = vld [vmem:[%s231 + $0x10] sm:$0xff]
    %v235 = vld [vmem:[%s231 + $0x18] sm:$0xff]
    %236 = vmatprep.subr.mxu0 0.0
    %237 = vmatpush1.msra.mxu0 %v232
    %238 = vmatprep.subr.mxu0 0.0
    %239 = vmatpush1.msra.mxu0 %v233
    %240 = vmatprep.subr.mxu0 0.0
    %241 = vmatpush1.msra.mxu0 %v234
    %242 = vmatprep.subr.mxu0 0.0
    %243 = vmatpush1.msra.mxu0 %v235
    %244 = vmatprep.subr.mxu0 0.0
    %245 = vmatpush1.msra.mxu0 0.0
    %246 = vmatprep.subr.mxu0 0.0
    %247 = vmatpush1.msra.mxu0 0.0
    %248 = vmatprep.subr.mxu0 0.0
    %249 = vmatpush1.msra.mxu0 0.0
    %250 = vmatprep.subr.mxu0 0.0
    %251 = vmatpush1.msra.mxu0 0.0
    %252 = vmatprep.subr.mxu0 0.0
    %253 = vmatpush1.msra.mxu0 0.0
    %254 = vmatprep.subr.mxu0 0.0
    %255 = vmatpush1.msra.mxu0 0.0
    %256 = vmatprep.subr.mxu0 0.0
    %257 = vmatpush1.msra.mxu0 0.0
    %258 = vmatprep.subr.mxu0 0.0
    %259 = vmatpush1.msra.mxu0 0.0
    %260 = vmatprep.subr.mxu0 0.0
    %261 = vmatpush1.msra.mxu0 0.0
    %262 = vmatprep.subr.mxu0 0.0
    %263 = vmatpush1.msra.mxu0 0.0
    %264 = vmatprep.subr.mxu0 0.0
    %265 = vmatpush1.msra.mxu0 0.0
    %266 = vmatprep.subr.mxu0 0.0
    %267 = vmatpush1.msra.mxu0 0.0
    %268 = vmatprep.subr.mxu0 0.0
    %269 = vmatpush1.msra.mxu0 0.0
    %270 = vmatprep.subr.mxu0 0.0
    %271 = vmatpush1.msra.mxu0 0.0
    %272 = vmatprep.subr.mxu0 0.0
    %273 = vmatpush1.msra.mxu0 0.0
    %274 = vmatprep.subr.mxu0 0.0
    %275 = vmatpush1.msra.mxu0 0.0
    %276 = vmatprep.subr.mxu0 0.0
    %277 = vmatpush1.msra.mxu0 0.0
    %278 = vmatprep.subr.mxu0 0.0
    %279 = vmatpush1.msra.mxu0 0.0
    %280 = vmatprep.subr.mxu0 0.0
    %281 = vmatpush1.msra.mxu0 0.0
    %282 = vmatprep.subr.mxu0 0.0
    %283 = vmatpush1.msra.mxu0 0.0
    %284 = vmatprep.subr.mxu0 0.0
    %285 = vmatpush1.msra.mxu0 0.0
    %286 = vmatprep.subr.mxu0 0.0
    %287 = vmatpush1.msra.mxu0 0.0
    %288 = vmatprep.subr.mxu0 0.0
    %289 = vmatpush1.msra.mxu0 0.0
    %290 = vmatprep.subr.mxu0 0.0
    %291 = vmatpush1.msra.mxu0 0.0
    %292 = vmatprep.subr.mxu0 0.0
    %293 = vmatpush1.msra.mxu0 0.0
    %294 = vmatprep.subr.mxu0 0.0
    %295 = vmatpush1.msra.mxu0 0.0
    %296 = vmatprep.subr.mxu0 0.0
    %297 = vmatpush1.msra.mxu0 0.0
    %298 = vmatprep.subr.mxu0 0.0
    %299 = vmatpush1.msra.mxu0 0.0
    %300 = vmatprep.mubr.f32.mxu0 0.0
    %301 = vmatmul.mubr.f32.gmra.mrb[0].mxu0 %v39
    %v302 = vpop.f32.mrb[0].mxu0
    %v303 = vadd.f32 0.0, %v302
    %v304 = vpop.f32.mrb[0].mxu0
    %305 = vmatprep.mubr.f32.mxu0 0.0
    %306 = vmatmul.mubr.f32.gmra.mrb[0].mxu0 %v42
    %v307 = vpop.f32.mrb[0].mxu0
    %v308 = vadd.f32 0.0, %v307
    %v309 = vpop.f32.mrb[0].mxu0
    %310 = vmatprep.mubr.f32.mxu0 0.0
    %311 = vmatmul.mubr.f32.gmra.mrb[0].mxu0 %v45
    %v312 = vpop.f32.mrb[0].mxu0
    %v313 = vadd.f32 0.0, %v312
    %v314 = vpop.f32.mrb[0].mxu0
    %315 = vmatprep.mubr.f32.mxu0 0.0
    %316 = vmatmul.mubr.f32.gmra.mrb[0].mxu0 %v48
    %v317 = vpop.f32.mrb[0].mxu0
    %v318 = vadd.f32 0.0, %v317
    %v319 = vpop.f32.mrb[0].mxu0
    %320 = vdwg.mxu0
    %v321 = vrot.slane %v303, 2
    %v322 = vrot.slane %v308, 2
    %v323 = vrot.slane %v313, 2
    %v324 = vrot.slane %v318, 2
    %vm325 = vcmp.lt.s32.totalorder %v140, 6
    %v326 = vsel %vm325, %v323, %v324
    %v327 = vsel %vm325, %v322, %v323
    %v328 = vsel %vm325, %v321, %v322
    %v329 = vsel %vm325, %v324, %v321
    %v330 = vadd.f32 %v213, %v328
    %v331 = vadd.f32 %v218, %v327
    %v332 = vadd.f32 %v223, %v326
    %v333 = vadd.f32 %v228, %v329
    %s334 = scalar_lea.vmem %s1, 96
    %v335 = vld [vmem:[%s334] sm:$0xff]
    %v336 = vld [vmem:[%s334 + $0x8] sm:$0xff]
    %v337 = vld [vmem:[%s334 + $0x10] sm:$0xff]
    %v338 = vld [vmem:[%s334 + $0x18] sm:$0xff]
    %339 = vmatprep.subr.mxu0 0.0
    %340 = vmatpush1.msra.mxu0 %v335
    %341 = vmatprep.subr.mxu0 0.0
    %342 = vmatpush1.msra.mxu0 %v336
    %343 = vmatprep.subr.mxu0 0.0
    %344 = vmatpush1.msra.mxu0 %v337
    %345 = vmatprep.subr.mxu0 0.0
    %346 = vmatpush1.msra.mxu0 %v338
    %347 = vmatprep.subr.mxu0 0.0
    %348 = vmatpush1.msra.mxu0 0.0
    %349 = vmatprep.subr.mxu0 0.0
    %350 = vmatpush1.msra.mxu0 0.0
    %351 = vmatprep.subr.mxu0 0.0
    %352 = vmatpush1.msra.mxu0 0.0
    %353 = vmatprep.subr.mxu0 0.0
    %354 = vmatpush1.msra.mxu0 0.0
    %355 = vmatprep.subr.mxu0 0.0
    %356 = vmatpush1.msra.mxu0 0.0
    %357 = vmatprep.subr.mxu0 0.0
    %358 = vmatpush1.msra.mxu0 0.0
    %359 = vmatprep.subr.mxu0 0.0
    %360 = vmatpush1.msra.mxu0 0.0
    %361 = vmatprep.subr.mxu0 0.0
    %362 = vmatpush1.msra.mxu0 0.0
    %363 = vmatprep.subr.mxu0 0.0
    %364 = vmatpush1.msra.mxu0 0.0
    %365 = vmatprep.subr.mxu0 0.0
    %366 = vmatpush1.msra.mxu0 0.0
    %367 = vmatprep.subr.mxu0 0.0
    %368 = vmatpush1.msra.mxu0 0.0
    %369 = vmatprep.subr.mxu0 0.0
    %370 = vmatpush1.msra.mxu0 0.0
    %371 = vmatprep.subr.mxu0 0.0
    %372 = vmatpush1.msra.mxu0 0.0
    %373 = vmatprep.subr.mxu0 0.0
    %374 = vmatpush1.msra.mxu0 0.0
    %375 = vmatprep.subr.mxu0 0.0
    %376 = vmatpush1.msra.mxu0 0.0
    %377 = vmatprep.subr.mxu0 0.0
    %378 = vmatpush1.msra.mxu0 0.0
    %379 = vmatprep.subr.mxu0 0.0
    %380 = vmatpush1.msra.mxu0 0.0
    %381 = vmatprep.subr.mxu0 0.0
    %382 = vmatpush1.msra.mxu0 0.0
    %383 = vmatprep.subr.mxu0 0.0
    %384 = vmatpush1.msra.mxu0 0.0
    %385 = vmatprep.subr.mxu0 0.0
    %386 = vmatpush1.msra.mxu0 0.0
    %387 = vmatprep.subr.mxu0 0.0
    %388 = vmatpush1.msra.mxu0 0.0
    %389 = vmatprep.subr.mxu0 0.0
    %390 = vmatpush1.msra.mxu0 0.0
    %391 = vmatprep.subr.mxu0 0.0
    %392 = vmatpush1.msra.mxu0 0.0
    %393 = vmatprep.subr.mxu0 0.0
    %394 = vmatpush1.msra.mxu0 0.0
    %395 = vmatprep.subr.mxu0 0.0
    %396 = vmatpush1.msra.mxu0 0.0
    %397 = vmatprep.subr.mxu0 0.0
    %398 = vmatpush1.msra.mxu0 0.0
    %399 = vmatprep.subr.mxu0 0.0
    %400 = vmatpush1.msra.mxu0 0.0
    %401 = vmatprep.subr.mxu0 0.0
    %402 = vmatpush1.msra.mxu0 0.0
    %403 = vmatprep.mubr.f32.mxu0 0.0
    %404 = vmatmul.mubr.f32.gmra.mrb[0].mxu0 %v39
    %v405 = vpop.f32.mrb[0].mxu0
    %v406 = vadd.f32 0.0, %v405
    %v407 = vpop.f32.mrb[0].mxu0
    %408 = vmatprep.mubr.f32.mxu0 0.0
    %409 = vmatmul.mubr.f32.gmra.mrb[0].mxu0 %v42
    %v410 = vpop.f32.mrb[0].mxu0
    %v411 = vadd.f32 0.0, %v410
    %v412 = vpop.f32.mrb[0].mxu0
    %413 = vmatprep.mubr.f32.mxu0 0.0
    %414 = vmatmul.mubr.f32.gmra.mrb[0].mxu0 %v45
    %v415 = vpop.f32.mrb[0].mxu0
    %v416 = vadd.f32 0.0, %v415
    %v417 = vpop.f32.mrb[0].mxu0
    %418 = vmatprep.mubr.f32.mxu0 0.0
    %419 = vmatmul.mubr.f32.gmra.mrb[0].mxu0 %v48
    %v420 = vpop.f32.mrb[0].mxu0
    %v421 = vadd.f32 0.0, %v420
    %v422 = vpop.f32.mrb[0].mxu0
    %423 = vdwg.mxu0
    %v424 = vrot.slane %v406, 3
    %v425 = vrot.slane %v411, 3
    %v426 = vrot.slane %v416, 3
    %v427 = vrot.slane %v421, 3
    %vm428 = vcmp.lt.s32.totalorder %v140, 5
    %v429 = vsel %vm428, %v426, %v427
    %v430 = vsel %vm428, %v425, %v426
    %v431 = vsel %vm428, %v424, %v425
    %v432 = vsel %vm428, %v427, %v424
    %v433 = vadd.f32 %v330, %v431
    %v434 = vadd.f32 %v331, %v430
    %v435 = vadd.f32 %v332, %v429
    %v436 = vadd.f32 %v333, %v432
    %v437 = vld [vmem:[%s3] sm:$0xff]
    %v438 = vld [vmem:[%s3 + $0x8] sm:$0xff]
    %v439 = vadd.f32 %v433, %v437
    %v440 = vadd.f32 %v434, %v438
    %v441 = vadd.f32 %v435, %v437
    %v442 = vadd.f32 %v436, %v438
    %vm443 = vcmask 195584
    %v444 = vsel %vm443, %v439, -inf
    %v445 = vsel %vm443, %v440, -inf
    %v446 = vmax.f32 %v444, %v445
    %v447 = vrot.slane %v446, 4
    %v448 = vmax.f32 %v446, %v447
    %v449 = vrot.slane %v448, 2
    %v450 = vmax.f32 %v448, %v449
    %v451 = vrot.slane %v450, 1
    %v452 = vmax.f32 %v450, %v451
    %v453 = vsel %vm443, %v441, -inf
    %v454 = vsel %vm443, %v442, -inf
    %v455 = vmax.f32 %v453, %v454
    %v456 = vrot.slane %v455, 4
    %v457 = vmax.f32 %v455, %v456
    %v458 = vrot.slane %v457, 2
    %v459 = vmax.f32 %v457, %v458
    %v460 = vrot.slane %v459, 1
    %v461 = vmax.f32 %v459, %v460
    %v462 = vld [vmem:[%s2] sm:$0x1]
    %v464 = vlaneseq
    %v465 = vshrl.u32 %v464, 7
    %v466 = vsub.s32 0, %v465
    %v467 = vrot.slane %v462, %v466
    %v469 = vadd.f32 %v452, %v467
    %v470 = vadd.f32 %v461, %v467
    %v471 = vmax.f32 %v469, 0.0
    %v472 = vmax.f32 %v470, 0.0
    %v473 = vld [vmem:[%s4] sm:$0xff]
    %v474 = vld [vmem:[%s4 + $0x8] sm:$0xff]
    %v475 = vld [vmem:[%s4 + $0x10] sm:$0xff]
    %v476 = vld [vmem:[%s5] sm:$0x1]
    %v478 = vlaneseq
    %v479 = vshrl.u32 %v478, 7
    %v480 = vsub.s32 0, %v479
    %v481 = vrot.slane %v476, %v480
    %v485 = vrot.slane %v472, 7
    %vm486 = vcmask 1041409
    %v487 = vsel %vm486, %v485, %v471
    %v488 = vsel %vm443, %v487, 0
    %490 = vmatprep.subr.mxu0 0.0
    %491 = vmatpush1.msra.mxu0 %v473
    %492 = vmatprep.subr.mxu0 0.0
    %493 = vmatpush1.msra.mxu0 %v474
    %494 = vmatprep.subr.mxu0 0.0
    %495 = vmatpush1.msra.mxu0 %v475
    %496 = vmatprep.subr.mxu0 0.0
    %497 = vmatpush1.msra.mxu0 0.0
    %498 = vmatprep.subr.mxu0 0.0
    %499 = vmatpush1.msra.mxu0 0.0
    %500 = vmatprep.subr.mxu0 0.0
    %501 = vmatpush1.msra.mxu0 0.0
    %502 = vmatprep.subr.mxu0 0.0
    %503 = vmatpush1.msra.mxu0 0.0
    %504 = vmatprep.subr.mxu0 0.0
    %505 = vmatpush1.msra.mxu0 0.0
    %506 = vmatprep.subr.mxu0 0.0
    %507 = vmatpush1.msra.mxu0 0.0
    %508 = vmatprep.subr.mxu0 0.0
    %509 = vmatpush1.msra.mxu0 0.0
    %510 = vmatprep.subr.mxu0 0.0
    %511 = vmatpush1.msra.mxu0 0.0
    %512 = vmatprep.subr.mxu0 0.0
    %513 = vmatpush1.msra.mxu0 0.0
    %514 = vmatprep.subr.mxu0 0.0
    %515 = vmatpush1.msra.mxu0 0.0
    %516 = vmatprep.subr.mxu0 0.0
    %517 = vmatpush1.msra.mxu0 0.0
    %518 = vmatprep.subr.mxu0 0.0
    %519 = vmatpush1.msra.mxu0 0.0
    %520 = vmatprep.subr.mxu0 0.0
    %521 = vmatpush1.msra.mxu0 0.0
    %522 = vmatprep.subr.mxu0 0.0
    %523 = vmatpush1.msra.mxu0 0.0
    %524 = vmatprep.subr.mxu0 0.0
    %525 = vmatpush1.msra.mxu0 0.0
    %526 = vmatprep.subr.mxu0 0.0
    %527 = vmatpush1.msra.mxu0 0.0
    %528 = vmatprep.subr.mxu0 0.0
    %529 = vmatpush1.msra.mxu0 0.0
    %530 = vmatprep.subr.mxu0 0.0
    %531 = vmatpush1.msra.mxu0 0.0
    %532 = vmatprep.subr.mxu0 0.0
    %533 = vmatpush1.msra.mxu0 0.0
    %534 = vmatprep.subr.mxu0 0.0
    %535 = vmatpush1.msra.mxu0 0.0
    %536 = vmatprep.subr.mxu0 0.0
    %537 = vmatpush1.msra.mxu0 0.0
    %538 = vmatprep.subr.mxu0 0.0
    %539 = vmatpush1.msra.mxu0 0.0
    %540 = vmatprep.subr.mxu0 0.0
    %541 = vmatpush1.msra.mxu0 0.0
    %542 = vmatprep.subr.mxu0 0.0
    %543 = vmatpush1.msra.mxu0 0.0
    %544 = vmatprep.subr.mxu0 0.0
    %545 = vmatpush1.msra.mxu0 0.0
    %546 = vmatprep.subr.mxu0 0.0
    %547 = vmatpush1.msra.mxu0 0.0
    %548 = vmatprep.subr.mxu0 0.0
    %549 = vmatpush1.msra.mxu0 0.0
    %550 = vmatprep.subr.mxu0 0.0
    %551 = vmatpush1.msra.mxu0 0.0
    %552 = vmatprep.subr.mxu0 0.0
    %553 = vmatpush1.msra.mxu0 0.0
    %554 = vmatprep.mubr.f32.mxu0 0.0
    %555 = vmatmul.mubr.f32.gmra.mrb[0].mxu0 %v488
    %v556 = vpop.f32.mrb[0].mxu0
    %v557 = vadd.f32 %v481, %v556
    %v558 = vpop.f32.mrb[0].mxu0
    %559 = vdwg.mxu0
    %vm560 = vcmask 25600
    %561 = vst.msk [vmem:[#allocation2] sm:$0x3] %vm560, %v557
    // Predicated region
    $region26: #{tpu_custom_call.1} parent=1 // pred_check
      _
    $region27: #{tpu_custom_call.1} parent=1 // pred_check_branch
      %563 = sbr.rel (0) target = $region29
    $region28: #{tpu_custom_call.1} parent=1 // pred_region
      %s565 = ssub.s32 32, 32
      %566 = vsyncadd [#allocation3], %s565
      %s568 = sshll.u32 [#allocation2], 4
      %s569 = int_to_ptr.vmem [resolvable:$true] %s568
      %571 = dma.vmem_to_hbm [thread:$0]  %s569, 32, %s6, [#allocation3]
    $region29: #{tpu_custom_call.1} parent=1 // pred_fallthru
      _
    // Predicated region
    $region30: #{tpu_custom_call.1} parent=1 // pred_check
      _
    $region31: #{tpu_custom_call.1} parent=1 // pred_check_branch
      %573 = sbr.rel (0) target = $region33
    $region32: #{tpu_custom_call.1} parent=1 // pred_region
      %574 = dma.done [#allocation3], 32
    $region33: #{tpu_custom_call.1} parent=1 // pred_fallthru
      _
    %575 = vsyncpa [#allocation3], 1

</llo_original>
